<compile_context>
chip_gen: v5e
topology: v5e:2x2
jax: 0.10.0
libtpu: 0.0.40
codegen_flags: <defaults>
</compile_context>

<pallas_src>
import functools

import numpy as np
import jax
import jax.numpy as jnp
from jax.experimental import pallas as pl
from jax.experimental.pallas import tpu as pltpu

F = 6              # raw features: hour, minute, second, year, month, day
FP = 8             # padded feature lanes: [h, m, s, year, month, day, 1(bias), 0]
K = 64             # embedding size per timestamp (32 linear || 32 sin)
PACK = 2           # timestamps packed per kernel row -> 128-lane output
TM_MAX = 8192      # max packed rows per grid step (= 16384 timestamps, ~4.5 MiB/step)


def _round_up(x, m):
    return ((x + m - 1) // m) * m


def _min_grid_steps():
    """v7x shares the parallel grid axis across 2 TensorCores -> want >=8 steps;
    single-TC v5e/v6e only need ~4 for DMA/compute overlap."""
    try:
        kind = jax.devices()[0].device_kind.lower()
    except Exception:
        return 8
    if "v5" in kind or "v6" in kind:
        return 4
    return 8


def _pick_tm(n2):
    """Packed-row tile: as large as possible, keep >= min grid steps, and do not
    over-pad tiny inputs."""
    return min(TM_MAX, max(8, _round_up(pl.cdiv(n2, _min_grid_steps()), 8)))


# ----------------------------- Pallas kernel -------------------------------- #

def d2v_encode_kernel(x_ref, w_ref, out_ref):
    # x_ref: (TM, 16)   w_ref: (16, 128)   out_ref: (TM, 128)
    # Bias is folded into w_ref via the constant-1.0 feature lane, so each step
    # is a single MXU matmul; sin is applied only to the periodic lanes
    # (32..63 / 96..127) via a (1,128) lane mask broadcast by jnp.where.
    y = jnp.dot(x_ref[...], w_ref[...], preferred_element_type=jnp.float32)
    lane = jax.lax.broadcasted_iota(jnp.int32, (1, PACK * K), 1)
    periodic = (lane & (K // 2)) != 0
    # NOTE(v7x): sin runs on all 128 lanes and half is discarded; per review this
    # only matters if VPU/EUP binds there, and sub-vreg slicing would cost more.
    out_ref[...] = jnp.where(periodic, jnp.sin(y), y).astype(out_ref.dtype)


def date2vec_encode(x_packed, w_big, tm):
    """x_packed: (N2_pad, 16) f32 -> (N2_pad, 128) f32 (two 64-d embeddings/row)."""
    n2_pad = x_packed.shape[0]
    return pl.pallas_call(
        d2v_encode_kernel,
        out_shape=jax.ShapeDtypeStruct((n2_pad, PACK * K), jnp.float32),
        grid_spec=pltpu.PrefetchScalarGridSpec(
            num_scalar_prefetch=0,
            grid=(n2_pad // tm,),
            in_specs=[
                pl.BlockSpec((tm, PACK * FP), lambda i: (i, 0)),
                # Constant block index: the 8 KiB weight stays resident in VMEM.
                pl.BlockSpec((PACK * FP, PACK * K), lambda i: (0, 0)),
            ],
            out_specs=pl.BlockSpec((tm, PACK * K), lambda i: (i, 0)),
        ),
        compiler_params=pltpu.CompilerParams(
            dimension_semantics=("parallel",),
            vmem_limit_bytes=32 * 1024 * 1024,
        ),
    )(x_packed, w_big)


# ----------------------- On-device calendar decomposition ------------------- #

def _calendar_features(days, sod):
    """(days since 1970-01-01, seconds-of-day) int32 -> (N, 8) f32 features
    [hour, minute, second, year, month, day, 1.0, 0.0]  (UTC, proleptic
    Gregorian; Howard Hinnant's civil_from_days).  Plain XLA ops on device."""
    hour = sod // 3600
    rem = sod - hour * 3600
    minute = rem // 60
    second = rem - minute * 60

    z = days + 719468
    era = z // 146097
    doe = z - era * 146097                                    # [0, 146096]
    yoe = (doe - doe // 1460 + doe // 36524 - doe // 146096) // 365
    doy = doe - (365 * yoe + yoe // 4 - yoe // 100)           # [0, 365]
    mp = (5 * doy + 2) // 153                                 # [0, 11]
    day = doy - (153 * mp + 2) // 5 + 1                       # [1, 31]
    month = mp + jnp.where(mp < 10, 3, -9)                    # [1, 12]
    year = yoe + era * 400 + (month <= 2).astype(jnp.int32)

    feat6 = jnp.stack(
        [c.astype(jnp.float32) for c in (hour, minute, second, year, month, day)],
        axis=-1)                                              # (N, 6)
    n = days.shape[0]
    ones = jnp.ones((n, 1), jnp.float32)    # bias lane (bias folded into w_big)
    zeros = jnp.zeros((n, 1), jnp.float32)
    return jnp.concatenate([feat6, ones, zeros], axis=-1)     # (N, 8)


@functools.partial(jax.jit, static_argnames=("tm",))
def _d2v_device(days, sod, w_big, *, tm):
    """(N,) int32 days / seconds-of-day -> (N, 64) f32 embeddings."""
    n = days.shape[0]
    feats = _calendar_features(days, sod)                     # (N, 8)
    n2_pad = _round_up(pl.cdiv(n, PACK), tm)
    pad_rows = n2_pad * PACK - n
    if pad_rows:
        feats = jnp.pad(feats, ((0, pad_rows), (0, 0)))       # padded rows -> 0
    x_packed = feats.reshape(n2_pad, PACK * FP)               # (N2_pad, 16)
    emb = date2vec_encode(x_packed, w_big, tm)                # (N2_pad, 128)
    return emb.reshape(n2_pad * PACK, K)[:n]                  # (N, 64)


# ------------------------------ Parameters ---------------------------------- #

def pack_params(w1, b1, w2, b2):
    """Fuse fc1/fc2 (weights AND biases) into one block-diagonal (16, 128) matrix.

    Per packed timestamp p (rows p*8..p*8+7, cols p*64..p*64+63):
      rows 0..5 : [fc1 | fc2] weights
      row  6    : [fc1 | fc2] bias   (multiplied by the constant-1 feature lane)
      row  7    : zero padding
      cols 0..31 linear branch, cols 32..63 periodic branch (sin in-kernel).
    """
    w = np.concatenate([np.asarray(w1), np.asarray(w2)], axis=1)        # (6, 64)
    b = np.concatenate([np.asarray(b1).reshape(1, -1),
                        np.asarray(b2).reshape(1, -1)], axis=1)         # (1, 64)
    w_ext = np.zeros((FP, K), np.float32)
    w_ext[:F, :] = w
    w_ext[F, :] = b[0]
    w_big = np.zeros((PACK * FP, PACK * K), np.float32)
    for p in range(PACK):
        w_big[p * FP:(p + 1) * FP, p * K:(p + 1) * K] = w_ext
    return jnp.asarray(w_big)


def init_params(key):
    """Deterministic stand-in for the checkpoint: PyTorch nn.Linear default init."""
    k1, k2, k3, k4 = jax.random.split(key, 4)
    bound = 1.0 / np.sqrt(F)
    w1 = jax.random.uniform(k1, (F, K // 2), jnp.float32, -bound, bound)
    b1 = jax.random.uniform(k2, (1, K // 2), jnp.float32, -bound, bound)
    w2 = jax.random.uniform(k3, (F, K // 2), jnp.float32, -bound, bound)
    b2 = jax.random.uniform(k4, (1, K // 2), jnp.float32, -bound, bound)
    return w1, b1, w2, b2


# -------------------------------- Forward ----------------------------------- #

def date2vec_forward(time_seq, params, utc_offset_seconds=0):
    """time_seq: (B, L) int unix timestamps -> (B, L, 64) float32 embeddings.

    Differences vs the PyTorch original (documented, not silent):
      * datetime.fromtimestamp uses the machine's local timezone; here a fixed
        utc_offset_seconds (default 0 = UTC) is used for determinism (DST not
        modeled).
      * PyTorch returns an object ndarray of per-sequence lists; this returns
        the equivalent dense array.
    """
    w1, b1, w2, b2 = params
    ts = np.asarray(time_seq)
    b, l = ts.shape
    # Host does only an int64-safe vectorized divmod (correct past 2038); the
    # resulting days / seconds-of-day fit int32 and are exact in f32 on device.
    ts64 = ts.reshape(-1).astype(np.int64) + int(utc_offset_seconds)
    days = ts64 // 86400
    sod = ts64 - days * 86400
    w_big = pack_params(w1, b1, w2, b2)
    tm = _pick_tm(pl.cdiv(b * l, PACK))
    emb = _d2v_device(jnp.asarray(days.astype(np.int32)),
                      jnp.asarray(sod.astype(np.int32)),
                      w_big, tm=tm)
    return emb.reshape(b, l, K)


# ------------------------- Reference (test only) ----------------------------- #

def timestamps_to_features_ref(ts_2d):
    """Reference-only numpy path: unix ts -> [h, m, s, year, month, day] (UTC)."""
    ts = np.asarray(ts_2d).astype(np.int64)
    dt = ts.astype("datetime64[s]")
    y = dt.astype("datetime64[Y]")
    mo = dt.astype("datetime64[M]")
    d = dt.astype("datetime64[D]")
    h = dt.astype("datetime64[h]")
    mi = dt.astype("datetime64[m]")
    year = y.astype(np.int64) + 1970
    month = (mo - y).astype(np.int64) + 1
    day = (d - mo).astype(np.int64) + 1
    hour = (h - d).astype(np.int64)
    minute = (mi - h).astype(np.int64)
    second = (dt - mi).astype(np.int64)
    return np.stack([hour, minute, second, year, month, day], axis=-1).astype(np.float32)


if __name__ == "__main__":
    key = jax.random.PRNGKey(0)
    kp, kt = jax.random.split(key)

    params = init_params(kp)

    # batch of 2 sequences, 8 timestamps each (unix seconds, 2017-2023 range)
    B, L = 2, 8
    timestamps = jax.random.randint(
        kt, (B, L), minval=1_500_000_000, maxval=1_700_000_000, dtype=jnp.int32)
    timestamps = np.asarray(timestamps).astype(np.int64)

    out = date2vec_forward(timestamps, params)
    out = jax.block_until_ready(out)

    # Reference: independent numpy datetime64 decomposition + plain JAX matmul/sin
    # with the original (unfused) parameters — torch Date2Vec.encode() semantics.
    feats = jnp.asarray(timestamps_to_features_ref(timestamps).reshape(-1, F))
    w1, b1, w2, b2 = params
    ref = jnp.concatenate(
        [feats @ w1 + b1, jnp.sin(feats @ w2 + b2)], axis=-1
    ).reshape(B, L, K)
    np.testing.assert_allclose(np.asarray(out), np.asarray(ref),
                               rtol=1e-5, atol=2e-3)

    assert out.shape == (B, L, K) and out.dtype == jnp.float32
    print("KERNEL_OK")
</pallas_src>

<mosaic_0001>
module attributes {stable_mosaic.version = 11 : i64} {
  func.func @d2v_encode_kernel(%arg0: i32, %arg1: memref<8x16xf32, #tpu.memory_space<vmem>>, %arg2: memref<16x128xf32, #tpu.memory_space<vmem>>, %arg3: memref<8x128xf32, #tpu.memory_space<vmem>>) attributes {dimension_semantics = [#tpu.dimension_semantics<parallel>], iteration_bounds = array<i64: 1>, scalar_prefetch = 0 : i64, scratch_operands = 0 : i64, tpu.core_type = #tpu.core_type<tc>, window_params = [{transform_indices = @transform_0, window_bounds = array<i64: 8, 16>}, {pipeline_mode = #tpu.pipeline_mode<synchronous>, transform_indices = @transform_1, window_bounds = array<i64: 16, 128>}, {transform_indices = @transform_2, window_bounds = array<i64: 8, 128>}]} {
    %c0 = arith.constant 0 : index
    %c0_0 = arith.constant 0 : index
    %0 = vector.load %arg1[%c0, %c0_0] : memref<8x16xf32, #tpu.memory_space<vmem>>, vector<8x16xf32>
    %c0_1 = arith.constant 0 : index
    %c0_2 = arith.constant 0 : index
    %1 = vector.load %arg2[%c0_1, %c0_2] : memref<16x128xf32, #tpu.memory_space<vmem>>, vector<16x128xf32>
    %cst = arith.constant dense<0.000000e+00> : vector<8x128xf32>
    %2 = tpu.matmul %0, %1, %cst {dimension_numbers = #tpu.dot_dimension_numbers<[1], [0], [0], [1], [0, 0, 1, 1], [], []>} : vector<8x16xf32>, vector<16x128xf32>, vector<8x128xf32> -> vector<8x128xf32>
    %3 = tpu.iota {dimensions = array<i32: 1>} : vector<1x128xi32>
    %c32_i32 = arith.constant 32 : i32
    %4 = vector.broadcast %c32_i32 : i32 to vector<1x128xi32>
    %5 = arith.andi %3, %4 : vector<1x128xi32>
    %c0_i32 = arith.constant 0 : i32
    %6 = vector.broadcast %c0_i32 : i32 to vector<1x128xi32>
    %7 = arith.cmpi ne, %5, %6 : vector<1x128xi32>
    %8 = math.sin %2 : vector<8x128xf32>
    %9 = vector.shape_cast %7 : vector<1x128xi1> to vector<1x128xi1>
    %10 = vector.broadcast %9 : vector<1x128xi1> to vector<8x128xi1>
    %11 = arith.select %10, %8, %2 : vector<8x128xi1>, vector<8x128xf32>
    %c0_3 = arith.constant 0 : index
    %c0_4 = arith.constant 0 : index
    %12 = vector.load %arg3[%c0_3, %c0_4] : memref<8x128xf32, #tpu.memory_space<vmem>>, vector<8x128xf32>
    tpu.vector_store %arg3[%c0_3, %c0_4], %11 {strides = array<i32>} : memref<8x128xf32, #tpu.memory_space<vmem>>, vector<8x128xf32>,
    return
  }
  func.func @transform_0(%arg0: i32) -> (i32, i32) {
    %c0_i32 = arith.constant 0 : i32
    %c0_i32_0 = arith.constant 0 : i32
    return %arg0, %c0_i32 : i32, i32
  }
  func.func @transform_1(%arg0: i32) -> (i32, i32) {
    %c0_i32 = arith.constant 0 : i32
    %c0_i32_0 = arith.constant 0 : i32
    %c0_i32_1 = arith.constant 0 : i32
    return %c0_i32, %c0_i32_0 : i32, i32
  }
  func.func @transform_2(%arg0: i32) -> (i32, i32) {
    %c0_i32 = arith.constant 0 : i32
    %c0_i32_0 = arith.constant 0 : i32
    return %arg0, %c0_i32 : i32, i32
  }
}

</mosaic_0001>

<llo_original>
// kernel: _d2v_device.1
$region0: #{_d2v_device.1}
  #allocation0 [shape = 'u32[]', space=smem, size = 0x4, offset = 0x4, fixed_abs, tag = 'smem constant byte address 0x4 - core index']
  #allocation1 [shape = 'u32[72,128]{1,0:T(1,128)}', space=vmem, size = 0x9000, scoped, tag = 'internal scratch']
  %s0 = inlined_call_operand.vmem [shape: f32[8,16], index: 0, kind: input, shape index: {}]
  %s1 = inlined_call_operand.vmem [shape: f32[16,128], index: 1, kind: input, shape index: {}]
  %s2 = inlined_call_operand.vmem [shape: f32[8,128], index: 2, kind: output, shape index: {}]
  %s3 = sld [smem:[#allocation0]]
  $region18: #{_d2v_device.1} parent=0
    _
  %s5 = ssub.s32 1, %s3
  %s6 = scalar_select 0, %s5, %s3
  // Predicated region
  $region2: #{_d2v_device.1} parent=0 // pred_check
    _
  $region3: #{_d2v_device.1} parent=0 // pred_check_branch
    %8 = sbr.rel (0) target = $region5
  $region4: #{_d2v_device.1} parent=0 // pred_region
    _
  $region5: #{_d2v_device.1} parent=0 // pred_fallthru
    _
  // Predicated region
  $region6: #{_d2v_device.1} parent=0 // pred_check
    _
  $region7: #{_d2v_device.1} parent=0 // pred_check_branch
    %10 = sbr.rel (0) target = $region9
  $region8: #{_d2v_device.1} parent=0 // pred_region
    _
  $region9: #{_d2v_device.1} parent=0 // pred_fallthru
    _
  %v11 = vld [vmem:[%s0] sm:$0xff]
  %v12 = vld [vmem:[%s1] sm:$0xff]
  %v13 = vld [vmem:[%s1 + $0x8] sm:$0xff]
  %vm14 = vcmask 130048
  %v16 = vsel %vm14, %v11, 0
  %18 = vmatpush.msra.mxu0 0.0
  %19 = vmatpush.msra.mxu0 0.0
  %20 = vmatpush.msra.mxu0 0.0
  %21 = vmatpush.msra.mxu0 0.0
  %22 = vmatpush.msra.mxu0 0.0
  %23 = vmatpush.msra.mxu0 0.0
  %24 = vmatpush.msra.mxu0 0.0
  %25 = vmatpush.msra.mxu0 0.0
  %26 = vmatpush.msra.mxu0 0.0
  %27 = vmatpush.msra.mxu0 0.0
  %28 = vmatpush.msra.mxu0 0.0
  %29 = vmatpush.msra.mxu0 0.0
  %30 = vmatpush.msra.mxu0 0.0
  %31 = vmatpush.msra.mxu0 0.0
  %32 = vmatpush.msra.mxu0 %v13
  %33 = vmatpush.msra.mxu0 %v12
  %34 = vmatmul.f32.gmra.mxu0 %v16
  %v35 = vpop.f32.mrf.mxu0
  %v36 = vadd.f32 0.0, %v35
  %37 = vdwg.mxu0
  %v38 = vlaneseq
  %v39 = vand.u32 %v38, 127
  %v40 = vand.u32 %v39, 32
  %vm41 = vcmp.ne.s32.totalorder %v40, 0
  %v42 = vand.u32 2147483647, %v36
  %vm43 = vcmp.le.f32.partialorder %v42, 0.7853982
  %vm44 = vcmp.lt.s32.totalorder %v36, 0
  %v45 = vand.u32 %v36, 2139095040
  %v46 = vshrl.u32 %v45, 23
  %v47 = vsub.s32 %v46, 127
  %v48 = vand.u32 2147483647, %v36
  %v49 = vand.u32 %v48, 8388607
  %v50 = vor.u32 %v49, 8388608
  %v51 = vsub.s32 0, %v50
  %v52 = vadd.s32 %v47, 1
  %vm53 = vcmp.gt.s32.totalorder %v52, 0
  %v54 = vsel %vm53, %v52, 0
  %v55 = vshrl.u32 %v54, 5
  %v56 = vand.u32 %v54, 31
  %v57 = vsub.s32 32, %v56
  %v58 = vshrl.u32 683565275, %v57
  %v59 = vshll.u32 683565275, %v56
  %v60 = vshrl.u32 2475754826, %v57
  %v61 = vor.u32 %v59, %v60
  %v62 = vshll.u32 2475754826, %v56
  %v63 = vshrl.u32 2131351028, %v57
  %v64 = vor.u32 %v62, %v63
  %v65 = vshll.u32 2131351028, %v56
  %v66 = vshrl.u32 2102212464, %v57
  %v67 = vor.u32 %v65, %v66
  %v68 = vshll.u32 2102212464, %v56
  %v69 = vshrl.u32 920167782, %v57
  %v70 = vor.u32 %v68, %v69
  %v71 = vshll.u32 920167782, %v56
  %v72 = vshrl.u32 1326507024, %v57
  %v73 = vor.u32 %v71, %v72
  %vm74 = vcmp.lt.s32.totalorder %v55, 1
  %vm75 = vcmp.lt.s32.totalorder %v55, 2
  %vm76 = vcmp.lt.s32.totalorder %v55, 3
  %vm77 = vcmp.lt.s32.totalorder %v55, 4
  %v78 = vsel %vm74, %v58, %v61
  %v79 = vsel %vm77, %v67, 2102212464
  %v80 = vsel %vm76, %v64, %v79
  %v81 = vsel %vm75, %v78, %v80
  %v82 = vsel %vm74, %v61, %v64
  %v83 = vsel %vm77, %v70, 920167782
  %v84 = vsel %vm76, %v67, %v83
  %v85 = vsel %vm75, %v82, %v84
  %v86 = vsel %vm74, %v64, %v67
  %v87 = vsel %vm77, %v73, 1326507024
  %v88 = vsel %vm76, %v70, %v87
  %v89 = vsel %vm75, %v86, %v88
  %v90 = vshll.u32 %v50, 8
  %v91 = vand.u32 %v90, 65535
  %v92 = vshrl.u32 %v90, 16
  %v93 = vand.u32 %v89, 65535
  %v94 = vshrl.u32 %v89, 16
  %v95 = vmul.u32 %v91, %v93
  %v96 = vmul.u32 %v91, %v94
  %v97 = vmul.u32 %v92, %v93
  %v98 = vmul.u32 %v92, %v94
  %v99 = vshll.u32 %v96, 16
  %v100 = vshrl.u32 %v96, 16
  %v101 = vshll.u32 %v97, 16
  %v102 = vshrl.u32 %v97, 16
  %vm103 = vc.u32 %v95, %v99
  %v104 = vsel %vm103, 1, 0
  %v105 = vadd.s32 %v95, %v99
  %v106 = vadd.s32 %v98, %v104
  %vm107 = vc.u32 %v105, %v101
  %v108 = vsel %vm107, 1, 0
  %v109 = vadd.s32 %v105, %v101
  %v110 = vadd.s32 %v106, %v108
  %v111 = vadd.s32 %v110, %v100
  %v112 = vadd.s32 %v111, %v102
  %v113 = vand.u32 %v90, 65535
  %v114 = vshrl.u32 %v90, 16
  %v115 = vand.u32 %v85, 65535
  %v116 = vshrl.u32 %v85, 16
  %v117 = vmul.u32 %v113, %v115
  %v118 = vmul.u32 %v113, %v116
  %v119 = vmul.u32 %v114, %v115
  %v120 = vmul.u32 %v114, %v116
  %v121 = vshll.u32 %v118, 16
  %v122 = vshrl.u32 %v118, 16
  %v123 = vshll.u32 %v119, 16
  %v124 = vshrl.u32 %v119, 16
  %vm125 = vc.u32 %v117, %v121
  %v126 = vsel %vm125, 1, 0
  %v127 = vadd.s32 %v117, %v121
  %v128 = vadd.s32 %v120, %v126
  %vm129 = vc.u32 %v127, %v123
  %v130 = vsel %vm129, 1, 0
  %v131 = vadd.s32 %v127, %v123
  %v132 = vadd.s32 %v128, %v130
  %v133 = vadd.s32 %v132, %v122
  %v134 = vadd.s32 %v133, %v124
  %v135 = vmul.u32 %v90, %v81
  %v136 = vadd.s32 %v112, %v131
  %vm137 = vc.u32 %v112, %v131
  %v138 = vadd.s32 %v134, 1
  %v139 = vsel %vm137, %v138, %v134
  %v140 = vadd.s32 %v135, %v139
  %v141 = vadd.s32 %v140, 536870912
  %v142 = vshrl.u32 %v141, 30
  %v143 = vshll.u32 %v142, 30
  %v144 = vsub.s32 %v140, %v143
  %vm145 = vcmp.lt.s32.totalorder %v144, 0
  %v146 = vsub.s32 0, %v144
  %v147 = vsel %vm145, %v146, %v144
  %v148 = vclz %v147
  %v149 = vsub.s32 %v148, 2
  %vm150 = vcmp.gt.s32.totalorder 0, %v149
  %v151 = vsel %vm150, 0, %v149
  %v152 = vsub.s32 32, %v151
  %v153 = vshll.u32 %v144, %v151
  %v154 = vshrl.u32 %v136, %v152
  %v155 = vor.u32 %v153, %v154
  %v156 = vsub.s32 4294967266, %v151
  %v157 = vadd.s32 %v156, 127
  %v158 = vshll.u32 %v157, 23
  %v159 = vor.u32 4788187, %v158
  %v160 = vand.u32 2147483647, %v159
  %v162 = vcvt.s32.f32 %v155
  %v163 = vmul.f32 %v162, %v160
  %v164 = vxor.u32 %v163, 2147483648
  %v165 = vsel %vm44, %v164, %v163
  %v166 = vsub.s32 4, %v142
  %v167 = vsel %vm44, %v166, %v142
  %v168 = vsel %vm43, %v36, %v165
  %v169 = vsel %vm43, 0, %v167
  %v170 = vmul.f32 %v168, %v168
  %v171 = vmul.f32 %v170, -0.001358992
  %v172 = vadd.f32 %v171, 0.041655596
  %v173 = vmul.f32 %v170, %v172
  %v174 = vadd.f32 %v173, -0.4999988
  %v175 = vmul.f32 %v170, %v174
  %v176 = vadd.f32 1.0, %v175
  %v177 = vmul.f32 %v168, %v168
  %v178 = vmul.f32 %v177, -0.00019511016
  %v179 = vadd.f32 %v178, 0.008332121
  %v180 = vmul.f32 %v177, %v179
  %v181 = vadd.f32 %v180, -0.16666654
  %v182 = vmul.f32 %v177, %v181
  %v183 = vadd.f32 %v182, 1.0
  %v184 = vmul.f32 %v183, %v168
  %vm185 = vweird.f32 %v36
  %v186 = vadd.s32 %v169, 3
  %v187 = vand.u32 %v186, 3
  %vm188 = vcmp.lt.s32.totalorder %v187, 2
  %vm189 = vcmp.eq.s32.totalorder %v187, 0
  %v190 = vxor.u32 %v184, 2147483648
  %v191 = vsel %vm189, %v176, %v190
  %vm192 = vcmp.eq.s32.totalorder %v187, 2
  %v193 = vxor.u32 %v176, 2147483648
  %v194 = vsel %vm192, %v193, %v184
  %v195 = vsel %vm188, %v191, %v194
  %v196 = vsel %vm185, nan, %v195
  %v197 = vsel %vm41, 1, 0
  %vm198 = vcmp.eq.s32.totalorder %v197, 1
  %v199 = vsel %vm198, %v196, %v36
  %200 = vst [vmem:[%s2] sm:$0xff] %v199
  // Predicated region
  $region10: #{_d2v_device.1} parent=0 // pred_check
    _
  $region11: #{_d2v_device.1} parent=0 // pred_check_branch
    %202 = sbr.rel (0) target = $region13
  $region12: #{_d2v_device.1} parent=0 // pred_region
    _
  $region13: #{_d2v_device.1} parent=0 // pred_fallthru
    _
  // Predicated region
  $region14: #{_d2v_device.1} parent=0 // pred_check
    _
  $region15: #{_d2v_device.1} parent=0 // pred_check_branch
    %204 = sbr.rel (0) target = $region17
  $region16: #{_d2v_device.1} parent=0 // pred_region
    _
  $region17: #{_d2v_device.1} parent=0 // pred_fallthru
    _

</llo_original>
